<compile_context>
chip_gen: v7x
topology: tpu7x:2x2x1
jax: 0.10.0
libtpu: 0.0.40
codegen_flags: <defaults>
</compile_context>

<pallas_src>
import functools

import jax
import jax.numpy as jnp
from jax.experimental import pallas as pl
from jax.experimental.pallas import tpu as pltpu


def _class_block(n_cls, per_class_bytes, target_block_bytes):
    """Classes per block so one block is ~target_block_bytes.

    Uses cdiv-style tail handling downstream (NOT a divisor of n_cls), so
    awkward / prime n_cls keeps large blocks instead of collapsing to 1.
    """
    return int(max(1, min(n_cls, target_block_bytes // max(1, per_class_bytes))))


# ----------------------------------------------------------------------------
# Primary (optimized) path: in-place write of the ctx rows into the donated
# full token embedding.
# ----------------------------------------------------------------------------
def _make_inplace_kernel(c_blk, n_ctx, n_cls, n_slots):
    n_full, tail = divmod(n_cls, c_blk)
    steps = [(s * c_blk, c_blk) for s in range(n_full)]
    if tail:
        steps.append((n_full * c_blk, tail))          # short last block (cdiv)
    n_steps = len(steps)

    def kernel(ctx_ref, emb_ref, out_ref, ctx_vmem, sems):
        # ctx_ref : (n_ctx, D) resident in VMEM (constant block index).
        # emb_ref : full embedding in HBM; aliased to out_ref and never
        #           touched, so prefix/suffix rows keep their original values.
        # out_ref : (n_cls, seq_len, D) in HBM (same buffer as emb_ref).
        # ctx_vmem: (c_blk, n_ctx, D) scratch holding the class-broadcast ctx.
        # sems    : (n_slots,) DMA semaphores -> up to n_slots copies in flight.
        del emb_ref

        # Materialize the broadcast ctx once; every DMA reads it.  Output
        # dtype follows the embedding dtype (in the module, ctx and the token
        # embedding share clip_model.dtype, so this cast is a no-op there).
        ctx_vmem[...] = jnp.broadcast_to(
            ctx_ref[...].astype(ctx_vmem.dtype)[None], ctx_vmem.shape
        )

        def copy(idx):
            start, size = steps[idx]
            # Write rows [1, 1+n_ctx) of classes [start, start+size).
            return pltpu.make_async_copy(
                ctx_vmem.at[pl.ds(0, size)],
                out_ref.at[pl.ds(start, size), pl.ds(1, n_ctx), :],
                sems.at[idx % n_slots],
            )

        # DMA ring: keep up to n_slots writes outstanding.  Safe because the
        # source (ctx_vmem) is read-only after init, destinations are disjoint
        # HBM windows, and each semaphore slot strictly alternates start/wait.
        for idx in range(n_steps):
            if idx >= n_slots:
                copy(idx - n_slots).wait()
            copy(idx).start()
        for idx in range(max(0, n_steps - n_slots), n_steps):
            copy(idx).wait()

    return kernel


def vl_prompt_learner_forward(ctx, embedding, *, target_block_bytes=4 << 20,
                              dma_slots=4):
    """Optimized VLPromptLearner.forward().

    Args:
      ctx:       (n_ctx, ctx_dim) learnable context vectors.
      embedding: (n_cls, seq_len, ctx_dim) full token embedding from __init__
                 (token_prefix == embedding[:, :1], token_suffix ==
                 embedding[:, 1+n_ctx:]).  Donate it so the output aliases it;
                 if it cannot be donated, prefer the concat path below.
      target_block_bytes: bytes of ctx rows written per DMA (4 MiB default;
                 ~8 MiB is reasonable on v7x).  Scratch is single-buffered so
                 VMEM cost ~= target_block_bytes.
      dma_slots: max outstanding DMAs (semaphore-ring depth).

    Returns:
      prompts: (n_cls, seq_len, ctx_dim) == cat([prefix, ctx, suffix], dim=1).
    """
    n_ctx, ctx_dim = ctx.shape
    n_cls, seq_len, emb_dim = embedding.shape
    assert emb_dim == ctx_dim
    assert seq_len >= 1 + n_ctx
    dtype = embedding.dtype
    itemsize = jnp.dtype(dtype).itemsize

    per_class_bytes = n_ctx * ctx_dim * itemsize
    c_blk = _class_block(n_cls, per_class_bytes, target_block_bytes)
    n_steps = -(-n_cls // c_blk)
    n_slots = max(1, min(int(dma_slots), n_steps))

    return pl.pallas_call(
        _make_inplace_kernel(c_blk, n_ctx, n_cls, n_slots),
        out_shape=jax.ShapeDtypeStruct((n_cls, seq_len, ctx_dim), dtype),
        grid=(1,),   # single kernel invocation: no per-step grid overhead
        in_specs=[
            # shared ctx: full block, constant index -> resident in VMEM.
            pl.BlockSpec((n_ctx, ctx_dim), lambda i: (0, 0)),
            # full embedding stays in HBM; aliased to the output.
            pl.BlockSpec(memory_space=pl.ANY),
        ],
        out_specs=pl.BlockSpec(memory_space=pl.ANY),
        scratch_shapes=[
            pltpu.VMEM((c_blk, n_ctx, ctx_dim), dtype),
            pltpu.SemaphoreType.DMA((n_slots,)),
        ],
        input_output_aliases={1: 0},
        compiler_params=pltpu.CompilerParams(
            dimension_semantics=("arbitrary",),
        ),
    )(ctx, embedding)


# ----------------------------------------------------------------------------
# Secondary path: literal (prefix, ctx, suffix) concat.  No donation hazard.
# ----------------------------------------------------------------------------
def _make_concat_kernel(n_ctx):
    def kernel(prefix_ref, ctx_ref, suffix_ref, out_ref):
        # prefix_ref : (C, 1, D); ctx_ref : (n_ctx, D);
        # suffix_ref : (C, L, D); out_ref : (C, 1+n_ctx+L, D)
        c, _, d = out_ref.shape

        # Tiny regions (1 + n_ctx rows per class): plain stores.  The ctx
        # broadcast is kept inline (not a first-step scratch init) because
        # these bytes must be stored every block anyway, the broadcast itself
        # is register-level, and an i==0 init would be unsafe under
        # "parallel"/megacore grid semantics.
        out_ref[:, 0:1, :] = prefix_ref[...].astype(out_ref.dtype)
        out_ref[:, 1:1 + n_ctx, :] = jnp.broadcast_to(
            ctx_ref[...].astype(out_ref.dtype)[None], (c, n_ctx, d)
        )

        # Bulk suffix (~93% of bytes): local DMA instead of a sublane-
        # misaligned (offset 1+n_ctx) masked-vst loop.
        pltpu.sync_copy(suffix_ref, out_ref.at[:, 1 + n_ctx:, :])

    return kernel


def vl_prompt_learner_forward_concat(
    ctx, token_prefix, token_suffix, *, target_block_bytes=2 << 20
):
    """VLPromptLearner.forward() from the registered prefix/suffix buffers.

    target_block_bytes defaults to 2 MiB: double-buffered prefix + suffix +
    output blocks are ~4x that, which fits v5e's 16 MiB default scoped VMEM
    (v6e/v7x have more headroom; raise it there if desired).
    """
    n_ctx, ctx_dim = ctx.shape
    n_cls = token_prefix.shape[0]
    suffix_len = token_suffix.shape[1]
    total_len = 1 + n_ctx + suffix_len
    dtype = token_prefix.dtype
    itemsize = jnp.dtype(dtype).itemsize

    per_class_bytes = total_len * ctx_dim * itemsize
    c_blk = _class_block(n_cls, per_class_bytes, target_block_bytes)
    grid = (pl.cdiv(n_cls, c_blk),)   # cdiv + masked tail; no divisor cliff

    return pl.pallas_call(
        _make_concat_kernel(n_ctx),
        out_shape=jax.ShapeDtypeStruct((n_cls, total_len, ctx_dim), dtype),
        grid=grid,
        in_specs=[
            pl.BlockSpec((c_blk, 1, ctx_dim), lambda i: (i, 0, 0)),
            pl.BlockSpec((n_ctx, ctx_dim), lambda i: (0, 0)),   # resident ctx
            pl.BlockSpec((c_blk, suffix_len, ctx_dim), lambda i: (i, 0, 0)),
        ],
        out_specs=pl.BlockSpec((c_blk, total_len, ctx_dim), lambda i: (i, 0, 0)),
        compiler_params=pltpu.CompilerParams(
            dimension_semantics=("parallel",),
        ),
    )(token_prefix, ctx, token_suffix)


if __name__ == "__main__":
    # Small synthetic shapes consistent with the module's __init__:
    #   n_cls classes, n_ctx context tokens, ctx_dim embedding width,
    #   tokenized prompt length seq_len (CLIP uses 77; use 16 here).
    # n_cls=10 is deliberately not a multiple of the forced block sizes below
    # so the tail paths are exercised.
    n_cls = 10
    n_ctx = 4
    ctx_dim = 128
    seq_len = 16
    itemsize = 4  # float32

    key = jax.random.PRNGKey(0)
    k_ctx, k_emb = jax.random.split(key)

    # nn.init.normal_(ctx_vectors, std=0.02)
    ctx = (0.02 * jax.random.normal(k_ctx, (n_ctx, ctx_dim))).astype(jnp.float32)

    # Deterministic stand-in for clip_model.token_embedding(tokenized_prompts)
    embedding = jax.random.normal(
        k_emb, (n_cls, seq_len, ctx_dim), dtype=jnp.float32
    )
    token_prefix = embedding[:, :1, :]          # registered buffer 'token_prefix'
    token_suffix = embedding[:, 1 + n_ctx:, :]  # registered buffer 'token_suffix'

    # Plain-JAX reference of the concat semantics.
    ref = jnp.concatenate(
        [token_prefix,
         jnp.broadcast_to(ctx[None], (n_cls, n_ctx, ctx_dim)),
         token_suffix],
        axis=1,
    )
    ref = jax.block_until_ready(ref)

    # --- Primary in-place path: donate a fresh copy of the embedding. -------
    fwd = jax.jit(vl_prompt_learner_forward, donate_argnums=(1,))
    prompts = jax.block_until_ready(fwd(ctx, embedding + 0.0))
    assert prompts.shape == (n_cls, seq_len, ctx_dim)
    assert jnp.allclose(prompts, ref)

    # Same path, forced multi-block + tail (exercises the DMA semaphore ring).
    fwd_small = jax.jit(
        functools.partial(
            vl_prompt_learner_forward,
            target_block_bytes=3 * n_ctx * ctx_dim * itemsize,  # c_blk = 3
            dma_slots=2,
        ),
        donate_argnums=(1,),
    )
    prompts_mb = jax.block_until_ready(fwd_small(ctx, embedding + 0.0))
    assert jnp.allclose(prompts_mb, ref)

    # --- Secondary concat path (module-literal buffers). --------------------
    prompts_c = jax.block_until_ready(
        vl_prompt_learner_forward_concat(ctx, token_prefix, token_suffix)
    )
    assert prompts_c.shape == (n_cls, seq_len, ctx_dim)
    assert jnp.allclose(prompts_c, ref)

    # Concat path with a forced small block -> cdiv grid with a partial tail.
    prompts_c2 = jax.block_until_ready(
        vl_prompt_learner_forward_concat(
            ctx, token_prefix, token_suffix,
            target_block_bytes=3 * seq_len * ctx_dim * itemsize,  # c_blk = 3
        )
    )
    assert jnp.allclose(prompts_c2, ref)

    # TODO(synk): fixed_embeddings / ZS_image_encoder / CLIP tokenization are
    # frozen __init__-time teacher-model artifacts, not part of forward(), and
    # are not reproduced here.
    print("KERNEL_OK")
</pallas_src>

<mosaic_0001>
module attributes {stable_mosaic.version = 11 : i64} {
  func.func @kernel(%arg0: i32, %arg1: memref<4x128xf32, #tpu.memory_space<vmem>>, %arg2: memref<10x16x128xf32, #tpu.memory_space<any>>, %arg3: memref<10x16x128xf32, #tpu.memory_space<any>>, %arg4: memref<10x4x128xf32, #tpu.memory_space<vmem>>, %arg5: memref<1x!tpu.dma_semaphore, #tpu.memory_space<semaphore_mem>>) attributes {dimension_semantics = [#tpu.dimension_semantics<arbitrary>], iteration_bounds = array<i64: 1>, scalar_prefetch = 0 : i64, scratch_operands = 2 : i64, tpu.core_type = #tpu.core_type<tc>, window_params = [{pipeline_mode = #tpu.pipeline_mode<synchronous>, transform_indices = @transform_0, window_bounds = array<i64: 4, 128>}, {}, {}]} {
    %c0 = arith.constant 0 : index
    %c0_0 = arith.constant 0 : index
    %0 = vector.load %arg1[%c0, %c0_0] : memref<4x128xf32, #tpu.memory_space<vmem>>, vector<4x128xf32>
    %1 = vector.shape_cast %0 : vector<4x128xf32> to vector<1x4x128xf32>
    %2 = vector.shape_cast %1 : vector<1x4x128xf32> to vector<1x4x128xf32>
    %3 = vector.broadcast %2 : vector<1x4x128xf32> to vector<10x4x128xf32>
    %c0_1 = arith.constant 0 : index
    %c0_2 = arith.constant 0 : index
    %c0_3 = arith.constant 0 : index
    %4 = vector.load %arg4[%c0_1, %c0_2, %c0_3] : memref<10x4x128xf32, #tpu.memory_space<vmem>>, vector<10x4x128xf32>
    tpu.vector_store %arg4[%c0_1, %c0_2, %c0_3], %3 {strides = array<i32>} : memref<10x4x128xf32, #tpu.memory_space<vmem>>, vector<10x4x128xf32>,
    %c0_i32 = arith.constant 0 : i32
    %c0_i32_4 = arith.constant 0 : i32
    %c0_i32_5 = arith.constant 0 : i32
    %c0_i32_6 = arith.constant 0 : i32
    %5 = tpu.memref_slice %arg4[%c0_i32_4, %c0_i32_5, %c0_i32_6] : memref<10x4x128xf32, #tpu.memory_space<vmem>> -> memref<10x4x128xf32, #tpu.memory_space<vmem>>
    %c0_i32_7 = arith.constant 0 : i32
    %c1_i32 = arith.constant 1 : i32
    %c0_i32_8 = arith.constant 0 : i32
    %6 = tpu.memref_slice %arg3[%c0_i32_7, %c1_i32, %c0_i32_8] : memref<10x16x128xf32, #tpu.memory_space<any>> -> memref<10x4x128xf32, #tpu.memory_space<any>>
    %7 = tpu.memref_slice %arg5[%c0_i32] : memref<1x!tpu.dma_semaphore, #tpu.memory_space<semaphore_mem>> -> memref<1x!tpu.dma_semaphore, #tpu.memory_space<semaphore_mem>>
    %8 = tpu.memref_squeeze %7 : memref<1x!tpu.dma_semaphore, #tpu.memory_space<semaphore_mem>> -> memref<!tpu.dma_semaphore, #tpu.memory_space<semaphore_mem>>
    tpu.enqueue_dma source(%5 : memref<10x4x128xf32, #tpu.memory_space<vmem>>) target(%6 : memref<10x4x128xf32, #tpu.memory_space<any>>) target_semaphore(%8 : memref<!tpu.dma_semaphore, #tpu.memory_space<semaphore_mem>>)
    %c0_i32_9 = arith.constant 0 : i32
    %c0_i32_10 = arith.constant 0 : i32
    %c0_i32_11 = arith.constant 0 : i32
    %c0_i32_12 = arith.constant 0 : i32
    %9 = tpu.memref_slice %arg4[%c0_i32_10, %c0_i32_11, %c0_i32_12] : memref<10x4x128xf32, #tpu.memory_space<vmem>> -> memref<10x4x128xf32, #tpu.memory_space<vmem>>
    %c0_i32_13 = arith.constant 0 : i32
    %c1_i32_14 = arith.constant 1 : i32
    %c0_i32_15 = arith.constant 0 : i32
    %10 = tpu.memref_slice %arg3[%c0_i32_13, %c1_i32_14, %c0_i32_15] : memref<10x16x128xf32, #tpu.memory_space<any>> -> memref<10x4x128xf32, #tpu.memory_space<any>>
    %11 = tpu.memref_slice %arg5[%c0_i32_9] : memref<1x!tpu.dma_semaphore, #tpu.memory_space<semaphore_mem>> -> memref<1x!tpu.dma_semaphore, #tpu.memory_space<semaphore_mem>>
    %12 = tpu.memref_squeeze %11 : memref<1x!tpu.dma_semaphore, #tpu.memory_space<semaphore_mem>> -> memref<!tpu.dma_semaphore, #tpu.memory_space<semaphore_mem>>
    tpu.wait_dma2 semaphore(%12 : memref<!tpu.dma_semaphore, #tpu.memory_space<semaphore_mem>>) src(%9 : memref<10x4x128xf32, #tpu.memory_space<vmem>>) dst(%10 : memref<10x4x128xf32, #tpu.memory_space<any>>)
    return
  }
  func.func @transform_0(%arg0: i32) -> (i32, i32) {
    %c0_i32 = arith.constant 0 : i32
    %c0_i32_0 = arith.constant 0 : i32
    %c0_i32_1 = arith.constant 0 : i32
    return %c0_i32, %c0_i32_0 : i32, i32
  }
}

</mosaic_0001>

<llo_original>
// kernel: vl_prompt_learner_forward.1
$region0: #{vl_prompt_learner_forward.1}
  #allocation0 [shape = 'u32[]', space=smem, size = 0x4, offset = 0x4, fixed_abs, tag = 'smem constant byte address 0x4 - core index']
  #allocation1 [shape = 'u32[144,128]{1,0:T(1,128)}', space=vmem, size = 0x12000, scoped, tag = 'internal scratch']
  #allocation2 [shape = 'f32[10,4,128]{2,1,0:T(4,128)}', space=vmem, size = 0x5000, scoped, tag = 'scratch operand']
  #allocation3 [shape = 's32[1]{0}', space=sflag, size = 0x4, scoped, tag = 'scratch operand']
  #allocation6 [shape = 's32[]', space=sflag, size = 0x4, offset = 0, fixed_abs, tag = 'sflag constant byte address 0x0 - dummy sync flag']
  %s0 = inlined_call_operand.hbm [shape: f32[4,128], index: 0, kind: input, shape index: {}]
  %s1 = inlined_call_operand.hbm [shape: f32[10,16,128], index: 1, kind: input, shape index: {}, may-alias: {1,2}]
  %s2 = inlined_call_operand.hbm [shape: f32[10,16,128], index: 2, kind: output, shape index: {}, may-alias: {1,2}]
  %s3 = sld [smem:[#allocation0]]
  $region10: #{vl_prompt_learner_forward.1} parent=0
    _
  %s5 = ssub.s32 1, %s3
  %s6 = scalar_select 0, %s5, %s3
  $region1: #{vl_prompt_learner_forward.1} parent=0
    #allocation4 [shape = 'u8[2048]{0}', space=vmem, size = 0x800, scoped, tag = 'input window, operand 0, single buffered']
    #allocation5 [shape = 's32[1]{0}', space=sflag, size = 0x4, scoped, tag = 'scoped memory for vl_prompt_learner_forward.1']
    %7 = vsyncpa [#allocation5], 0
    // Predicated region
    $region2: #{vl_prompt_learner_forward.1} parent=1 // pred_check
      _
    $region3: #{vl_prompt_learner_forward.1} parent=1 // pred_check_branch
      %9 = sbr.rel (0) target = $region5
    $region4: #{vl_prompt_learner_forward.1} parent=1 // pred_region
      %s11 = ssub.s32 64, 64
      %12 = vsyncadd [#allocation5], %s11
      %s14 = sshll.u32 [#allocation4], 4
      %s15 = int_to_ptr.vmem [resolvable:$true] %s14
      %17 = dma.hbm_to_vmem [thread:$0]  %s0, 64, %s15, [#allocation5]
    $region5: #{vl_prompt_learner_forward.1} parent=1 // pred_fallthru
      _
    // Predicated region
    $region6: #{vl_prompt_learner_forward.1} parent=1 // pred_check
      _
    $region7: #{vl_prompt_learner_forward.1} parent=1 // pred_check_branch
      %19 = sbr.rel (0) target = $region9
    $region8: #{vl_prompt_learner_forward.1} parent=1 // pred_region
      %20 = dma.done [#allocation5], 64
    $region9: #{vl_prompt_learner_forward.1} parent=1 // pred_fallthru
      _
    %v21 = vld [vmem:[#allocation4] sm:$0xf]
    %22 = vst [vmem:[#allocation2] sm:$0xf] %v21
    %23 = vst [vmem:[#allocation2 + $0x4] sm:$0xf] %v21
    %24 = vst [vmem:[#allocation2 + $0x8] sm:$0xf] %v21
    %25 = vst [vmem:[#allocation2 + $0xc] sm:$0xf] %v21
    %26 = vst [vmem:[#allocation2 + $0x10] sm:$0xf] %v21
    %27 = vst [vmem:[#allocation2 + $0x14] sm:$0xf] %v21
    %28 = vst [vmem:[#allocation2 + $0x18] sm:$0xf] %v21
    %29 = vst [vmem:[#allocation2 + $0x1c] sm:$0xf] %v21
    %30 = vst [vmem:[#allocation2 + $0x20] sm:$0xf] %v21
    %31 = vst [vmem:[#allocation2 + $0x24] sm:$0xf] %v21
    %s32 = scalar_lea.hbm %s2, 16
    %s34 = sshll.u32 [#allocation2], 4
    %s35 = int_to_ptr.vmem [resolvable:$true] %s34
    %37 = dma.vmem_to_hbm [thread:$0]  %s35, 640, %s32, [#allocation3], 64, 256, 4
    %s38 = smul.u32 10, 4
    %s39 = smul.u32 %s38, 1
    %s40 = sshll.u32 %s39, 4
    %41 = dma.done [#allocation3], %s40
    %42 = vsyncpa [#allocation5], 1
  %43 = vsyncmov [#allocation3]
  %s44 = vpop.sfrf %43
  %p45 = scmp.eq.s32.totalorder %s44, 0
  %p46 = pneg %p45
  %48 = shalt.err (%p46)

</llo_original>
